<compile_context>
chip_gen: v7x
topology: tpu7x:2x2x1
jax: 0.10.0
libtpu: 0.0.40
codegen_flags: <defaults>
</compile_context>

<pallas_src>
import jax
import jax.numpy as jnp
from jax.experimental import pallas as pl
from jax.experimental.pallas import tpu as pltpu

HIDDEN_DIM = 32      # TODO(synk): real vit_b_16 hidden_dim is 768; scaled-down stand-in.
NUM_CLASSES = 1
VIT_RES = 224        # F.interpolate target fed to the backbone
OUT_RES = 512        # upsample_output target
CONV1_OUT = 256      # FixedConv2d(hidden -> 256)
CONV2_OUT = 128      # FixedConv2d(256   -> 128)
CONV3_OUT = 64       # FixedConv2d(128   -> 64)

# FixedConv2d base filter == outer(_BASE_U, _BASE_V):
#   [[-1,-4,-6,-4,-1],[-2,-8,-12,-8,-2],[0,0,0,0,0],[2,8,12,8,2],[1,4,6,4,1]]
_BASE_U = (-1.0, -2.0, 0.0, 2.0, 1.0)   # vertical (H) factor
_BASE_V = (1.0, 4.0, 6.0, 4.0, 1.0)     # horizontal (W) factor


# ----------------------- constant matrices / vectors (wrapper side) -----------------------

def _bilinear_matrix(out_size, in_size):
    # PyTorch bilinear, align_corners=False (incl. the >=0 clamp). Rows sum to 1.
    out_idx = jnp.arange(out_size, dtype=jnp.float32)
    src = jnp.maximum((out_idx + 0.5) * (in_size / out_size) - 0.5, 0.0)
    i0 = jnp.clip(jnp.floor(src).astype(jnp.int32), 0, in_size - 1)
    i1 = jnp.minimum(i0 + 1, in_size - 1)
    l1 = src - i0.astype(jnp.float32)
    l0 = 1.0 - l1
    return (l0[:, None] * jax.nn.one_hot(i0, in_size, dtype=jnp.float32)
            + l1[:, None] * jax.nn.one_hot(i1, in_size, dtype=jnp.float32))


def _conv5_matrix(n, taps):
    # M[i, p] = taps[p - i + 2]  (cross-correlation, stride 1, zero pad 2), so a
    # 5-tap filter along H is M @ X and along W is X @ M.T.
    taps = jnp.asarray(taps, jnp.float32)
    i = jnp.arange(n)[:, None]
    p = jnp.arange(n)[None, :]
    k = p - i + 2
    return jnp.where((k >= 0) & (k <= 4), taps[jnp.clip(k, 0, 4)], 0.0)


def _pool_weights(h, w):
    # Global mean over the 224x224 bilinear resize == weighted pool on the raw
    # image (rows of a bilinear matrix sum to 1):  mean = (s_h^T X s_w) / 224^2.
    s_h = jnp.sum(_bilinear_matrix(VIT_RES, h), axis=0)          # (h,)
    s_w = jnp.sum(_bilinear_matrix(VIT_RES, w), axis=0)          # (w,)
    return (s_h[:, None] * s_w[None, :]) / float(VIT_RES * VIT_RES)   # (h, w)


def _decoder_vectors():
    # Decoder input (after up1 of the 1x1 map) is v1 * ones(2,2) = rank-1, and
    # every decoder stage is a left/right matmul by a constant factor matrix,
    # so the 8x8 conv3 output is  v1 * 256*128 * colv8 (x) rowv8  with:
    #   colv8 = Mu8 @ R48 @ Mu4 @ R24 @ Mu2 @ ones(2)     (H factors)
    #   rowv8 = Mv8 @ R48 @ Mv4 @ R24 @ Mv2 @ ones(2)     (W factors)
    # and the final 8->512 bilinear upsample maps them to 512-vectors.
    u = jnp.asarray(_BASE_U, jnp.float32)
    v = jnp.asarray(_BASE_V, jnp.float32)
    r24 = _bilinear_matrix(4, 2)                 # up2: 2 -> 4
    r48 = _bilinear_matrix(8, 4)                 # up3: 4 -> 8
    ones2 = jnp.ones((2,), jnp.float32)          # up1 of a 1x1 map = replication
    colv8 = _conv5_matrix(8, u) @ (r48 @ (_conv5_matrix(4, u)
            @ (r24 @ (_conv5_matrix(2, u) @ ones2))))                       # (8,)
    rowv8 = _conv5_matrix(8, v) @ (r48 @ (_conv5_matrix(4, v)
            @ (r24 @ (_conv5_matrix(2, v) @ ones2))))                       # (8,)
    m512 = _bilinear_matrix(OUT_RES, 8)          # upsample_output: 8 -> 512
    colv = (m512 @ colv8).reshape(OUT_RES, 1)    # (512, 1)
    rowv = (m512 @ rowv8).reshape(1, OUT_RES)    # (1, 512)
    return colv, rowv


# ------------------------------------ fused kernel ------------------------------------

def _fixed_seg_kernel(x_ref, wpool_ref, fw_ref, fb_ref, head_ref,
                      col_ref, row_ref, out_ref):
    # --- ViT stand-in: bilinear 224x224 resize -> mean pool -> linear -------------
    # TODO(synk): frozen pretrained vit_b_16 backbone has no clean Pallas equivalent
    # (no checkpoint load allowed); this deterministic stand-in replaces it.
    num_ch = x_ref.shape[1]
    wpool = wpool_ref[...]                                   # (H, W)
    feats = fb_ref[...]                                      # (1, HIDDEN_DIM)
    for ci in range(num_ch):                                 # static unroll (3 channels)
        pooled = jnp.sum(x_ref[0, ci] * wpool)               # scalar weighted pool
        feats = feats + pooled * fw_ref[pl.ds(ci, 1), :]     # (1, HIDDEN_DIM)

    # --- decoder (exactly folded, see _decoder_vectors) ---------------------------
    # conv1 sums hidden_dim channel-identical 2x2 maps -> v1; conv2/conv3 channel
    # sums are the 256*128 factor; the 1x1 head is sum(final_w)*X + final_b.
    v1 = jnp.sum(feats)
    scale = v1 * (float(CONV1_OUT * CONV2_OUT) * head_ref[0])     # v1 * 32768 * sum(final_w)

    th = col_ref.shape[0]
    colb = jnp.broadcast_to(col_ref[...], (th, OUT_RES))          # lane broadcast
    rowb = jnp.broadcast_to(row_ref[...], (th, OUT_RES))          # sublane broadcast
    tile = scale * colb * rowb + head_ref[1]                      # (tile_h, 512), lane-dense
    out_ref[...] = tile[None, None]                               # (1, 1, tile_h, 512)


# -------------------------------------- wrapper --------------------------------------

def fixed_seg_net_forward(params, x, *, tile_h=256):
    # x: NCHW (B, 3, H, W) -> (B, NUM_CLASSES, 512, 512), NCHW, float32.
    b, c, h, w = x.shape
    assert params["feat_w"].shape == (c, HIDDEN_DIM)
    assert params["final_w"].shape == (NUM_CLASSES, CONV3_OUT) and NUM_CLASSES == 1
    assert OUT_RES % tile_h == 0 and tile_h % 8 == 0
    n_h = OUT_RES // tile_h

    wpool = _pool_weights(h, w)                                    # (h, w) constant
    colv, rowv = _decoder_vectors()                                # (512,1), (1,512) constants
    fb2 = params["feat_b"].reshape(1, HIDDEN_DIM)
    head = jnp.stack([jnp.sum(params["final_w"]),
                      params["final_b"][0]]).astype(jnp.float32)   # (wsum, bias) in SMEM

    flops = b * (2 * c * h * w + 2 * c * HIDDEN_DIM) + b * n_h * 3 * tile_h * OUT_RES
    bytes_accessed = 4 * (b * c * h * w + h * w + c * HIDDEN_DIM + HIDDEN_DIM
                          + 2 + 2 * OUT_RES + b * OUT_RES * OUT_RES)

    return pl.pallas_call(
        _fixed_seg_kernel,
        out_shape=jax.ShapeDtypeStruct((b, NUM_CLASSES, OUT_RES, OUT_RES), jnp.float32),
        grid=(b, n_h),
        in_specs=[
            pl.BlockSpec((1, c, h, w), lambda i, j: (i, 0, 0, 0)),
            pl.BlockSpec((h, w), lambda i, j: (0, 0)),
            pl.BlockSpec((c, HIDDEN_DIM), lambda i, j: (0, 0)),
            pl.BlockSpec((1, HIDDEN_DIM), lambda i, j: (0, 0)),
            pl.BlockSpec(memory_space=pltpu.MemorySpace.SMEM),
            pl.BlockSpec((tile_h, 1), lambda i, j: (j, 0)),
            pl.BlockSpec((1, OUT_RES), lambda i, j: (0, 0)),
        ],
        out_specs=pl.BlockSpec((1, NUM_CLASSES, tile_h, OUT_RES),
                               lambda i, j: (i, 0, j, 0)),
        compiler_params=pltpu.CompilerParams(
            dimension_semantics=("parallel", "parallel")),
        cost_estimate=pl.CostEstimate(flops=flops, transcendentals=0,
                                      bytes_accessed=bytes_accessed),
    )(x, wpool, params["feat_w"], fb2, head, colv, rowv)


def init_params(key):
    k1, k2, k3, k4 = jax.random.split(key, 4)
    return {
        "feat_w": jax.random.normal(k1, (3, HIDDEN_DIM), jnp.float32) * 0.1,
        "feat_b": jax.random.normal(k2, (HIDDEN_DIM,), jnp.float32) * 0.1,
        "final_w": jax.random.normal(k3, (NUM_CLASSES, CONV3_OUT), jnp.float32) * 0.1,
        "final_b": jax.random.normal(k4, (NUM_CLASSES,), jnp.float32) * 0.1,
    }


if __name__ == "__main__":
    key = jax.random.PRNGKey(0)
    pkey, xkey = jax.random.split(key)
    params = init_params(pkey)
    x = jax.random.normal(xkey, (2, 3, 32, 32), jnp.float32)   # NCHW, like PyTorch
    fwd = jax.jit(fixed_seg_net_forward)
    out = jax.block_until_ready(fwd(params, x))
    assert out.shape == (2, NUM_CLASSES, 512, 512), out.shape
    assert out.dtype == jnp.float32
    assert bool(jnp.all(jnp.isfinite(out)))
    print("KERNEL_OK")
</pallas_src>

<mosaic_0001>
module attributes {stable_mosaic.version = 11 : i64} {
  func.func @_fixed_seg_kernel(%arg0: i32, %arg1: i32, %arg2: memref<1x3x32x32xf32, #tpu.memory_space<vmem>>, %arg3: memref<32x32xf32, #tpu.memory_space<vmem>>, %arg4: memref<3x32xf32, #tpu.memory_space<vmem>>, %arg5: memref<1x32xf32, #tpu.memory_space<vmem>>, %arg6: memref<2xf32, #tpu.memory_space<smem>>, %arg7: memref<256x1xf32, #tpu.memory_space<vmem>>, %arg8: memref<1x512xf32, #tpu.memory_space<vmem>>, %arg9: memref<1x1x256x512xf32, #tpu.memory_space<vmem>>) attributes {dimension_semantics = [#tpu.dimension_semantics<parallel>, #tpu.dimension_semantics<parallel>], iteration_bounds = array<i64: 2, 2>, scalar_prefetch = 0 : i64, scratch_operands = 0 : i64, tpu.core_type = #tpu.core_type<tc>, window_params = [{transform_indices = @transform_0, window_bounds = array<i64: 1, 3, 32, 32>}, {pipeline_mode = #tpu.pipeline_mode<synchronous>, transform_indices = @transform_1, window_bounds = array<i64: 32, 32>}, {pipeline_mode = #tpu.pipeline_mode<synchronous>, transform_indices = @transform_2, window_bounds = array<i64: 3, 32>}, {pipeline_mode = #tpu.pipeline_mode<synchronous>, transform_indices = @transform_3, window_bounds = array<i64: 1, 32>}, {transform_indices = @transform_4, window_bounds = array<i64: 2>}, {transform_indices = @transform_5, window_bounds = array<i64: 256, 1>}, {pipeline_mode = #tpu.pipeline_mode<synchronous>, transform_indices = @transform_6, window_bounds = array<i64: 1, 512>}, {transform_indices = @transform_7, window_bounds = array<i64: 1, 1, 256, 512>}]} {
    %c0 = arith.constant 0 : index
    %c0_0 = arith.constant 0 : index
    %0 = vector.load %arg3[%c0, %c0_0] : memref<32x32xf32, #tpu.memory_space<vmem>>, vector<32x32xf32>
    %c0_1 = arith.constant 0 : index
    %c0_2 = arith.constant 0 : index
    %1 = vector.load %arg5[%c0_1, %c0_2] : memref<1x32xf32, #tpu.memory_space<vmem>>, vector<1x32xf32>
    %c0_3 = arith.constant 0 : index
    %c0_4 = arith.constant 0 : index
    %c0_5 = arith.constant 0 : index
    %c0_6 = arith.constant 0 : index
    %2 = vector.load %arg2[%c0_3, %c0_4, %c0_5, %c0_6] : memref<1x3x32x32xf32, #tpu.memory_space<vmem>>, vector<1x1x32x32xf32>
    %3 = vector.shape_cast %2 : vector<1x1x32x32xf32> to vector<32x32xf32>
    %4 = arith.mulf %3, %0 : vector<32x32xf32>
    %5 = vector.shape_cast %4 : vector<32x32xf32> to vector<1x32x32xf32>
    %cst = arith.constant dense<0.000000e+00> : vector<1xf32>
    %6 = vector.multi_reduction <add>, %5, %cst [1, 2] : vector<1x32x32xf32> to vector<1xf32>
    %7 = vector.shape_cast %6 : vector<1xf32> to vector<1x1x1xf32>
    %8 = vector.extract %7[0, 0, 0] : f32 from vector<1x1x1xf32>
    %c0_7 = arith.constant 0 : index
    %c0_8 = arith.constant 0 : index
    %9 = vector.load %arg4[%c0_7, %c0_8] : memref<3x32xf32, #tpu.memory_space<vmem>>, vector<1x32xf32>
    %10 = vector.broadcast %8 : f32 to vector<1x32xf32>
    %11 = arith.mulf %10, %9 : vector<1x32xf32>
    %12 = arith.addf %1, %11 : vector<1x32xf32>
    %c0_9 = arith.constant 0 : index
    %c1 = arith.constant 1 : index
    %c0_10 = arith.constant 0 : index
    %c0_11 = arith.constant 0 : index
    %13 = vector.load %arg2[%c0_9, %c1, %c0_10, %c0_11] : memref<1x3x32x32xf32, #tpu.memory_space<vmem>>, vector<1x1x32x32xf32>
    %14 = vector.shape_cast %13 : vector<1x1x32x32xf32> to vector<32x32xf32>
    %15 = arith.mulf %14, %0 : vector<32x32xf32>
    %16 = vector.shape_cast %15 : vector<32x32xf32> to vector<1x32x32xf32>
    %cst_12 = arith.constant dense<0.000000e+00> : vector<1xf32>
    %17 = vector.multi_reduction <add>, %16, %cst_12 [1, 2] : vector<1x32x32xf32> to vector<1xf32>
    %18 = vector.shape_cast %17 : vector<1xf32> to vector<1x1x1xf32>
    %19 = vector.extract %18[0, 0, 0] : f32 from vector<1x1x1xf32>
    %c1_13 = arith.constant 1 : index
    %c0_14 = arith.constant 0 : index
    %20 = vector.load %arg4[%c1_13, %c0_14] : memref<3x32xf32, #tpu.memory_space<vmem>>, vector<1x32xf32>
    %21 = vector.broadcast %19 : f32 to vector<1x32xf32>
    %22 = arith.mulf %21, %20 : vector<1x32xf32>
    %23 = arith.addf %12, %22 : vector<1x32xf32>
    %c0_15 = arith.constant 0 : index
    %c2 = arith.constant 2 : index
    %c0_16 = arith.constant 0 : index
    %c0_17 = arith.constant 0 : index
    %24 = vector.load %arg2[%c0_15, %c2, %c0_16, %c0_17] : memref<1x3x32x32xf32, #tpu.memory_space<vmem>>, vector<1x1x32x32xf32>
    %25 = vector.shape_cast %24 : vector<1x1x32x32xf32> to vector<32x32xf32>
    %26 = arith.mulf %25, %0 : vector<32x32xf32>
    %27 = vector.shape_cast %26 : vector<32x32xf32> to vector<1x32x32xf32>
    %cst_18 = arith.constant dense<0.000000e+00> : vector<1xf32>
    %28 = vector.multi_reduction <add>, %27, %cst_18 [1, 2] : vector<1x32x32xf32> to vector<1xf32>
    %29 = vector.shape_cast %28 : vector<1xf32> to vector<1x1x1xf32>
    %30 = vector.extract %29[0, 0, 0] : f32 from vector<1x1x1xf32>
    %c2_19 = arith.constant 2 : index
    %c0_20 = arith.constant 0 : index
    %31 = vector.load %arg4[%c2_19, %c0_20] : memref<3x32xf32, #tpu.memory_space<vmem>>, vector<1x32xf32>
    %32 = vector.broadcast %30 : f32 to vector<1x32xf32>
    %33 = arith.mulf %32, %31 : vector<1x32xf32>
    %34 = arith.addf %23, %33 : vector<1x32xf32>
    %35 = vector.shape_cast %34 : vector<1x32xf32> to vector<1x1x32xf32>
    %cst_21 = arith.constant dense<0.000000e+00> : vector<1xf32>
    %36 = vector.multi_reduction <add>, %35, %cst_21 [1, 2] : vector<1x1x32xf32> to vector<1xf32>
    %37 = vector.shape_cast %36 : vector<1xf32> to vector<1x1x1xf32>
    %38 = vector.extract %37[0, 0, 0] : f32 from vector<1x1x1xf32>
    %c0_22 = arith.constant 0 : index
    %39 = memref.load %arg6[%c0_22] : memref<2xf32, #tpu.memory_space<smem>>
    %cst_23 = arith.constant 3.276800e+04 : f32
    %40 = arith.mulf %cst_23, %39 : f32
    %41 = arith.mulf %38, %40 : f32
    %c0_24 = arith.constant 0 : index
    %c0_25 = arith.constant 0 : index
    %42 = vector.load %arg7[%c0_24, %c0_25] : memref<256x1xf32, #tpu.memory_space<vmem>>, vector<256x1xf32>
    %43 = vector.shape_cast %42 : vector<256x1xf32> to vector<256x1xf32>
    %44 = vector.broadcast %43 : vector<256x1xf32> to vector<256x512xf32>
    %c0_26 = arith.constant 0 : index
    %c0_27 = arith.constant 0 : index
    %45 = vector.load %arg8[%c0_26, %c0_27] : memref<1x512xf32, #tpu.memory_space<vmem>>, vector<1x512xf32>
    %46 = vector.shape_cast %45 : vector<1x512xf32> to vector<1x512xf32>
    %47 = vector.broadcast %46 : vector<1x512xf32> to vector<256x512xf32>
    %48 = vector.broadcast %41 : f32 to vector<256x512xf32>
    %49 = arith.mulf %48, %44 : vector<256x512xf32>
    %50 = arith.mulf %49, %47 : vector<256x512xf32>
    %c1_28 = arith.constant 1 : index
    %51 = memref.load %arg6[%c1_28] : memref<2xf32, #tpu.memory_space<smem>>
    %52 = vector.broadcast %51 : f32 to vector<256x512xf32>
    %53 = arith.addf %50, %52 : vector<256x512xf32>
    %54 = vector.shape_cast %53 : vector<256x512xf32> to vector<1x1x256x512xf32>
    %c0_29 = arith.constant 0 : index
    %c0_30 = arith.constant 0 : index
    %c0_31 = arith.constant 0 : index
    %c0_32 = arith.constant 0 : index
    %55 = vector.load %arg9[%c0_29, %c0_30, %c0_31, %c0_32] : memref<1x1x256x512xf32, #tpu.memory_space<vmem>>, vector<1x1x256x512xf32>
    tpu.vector_store %arg9[%c0_29, %c0_30, %c0_31, %c0_32], %54 {strides = array<i32>} : memref<1x1x256x512xf32, #tpu.memory_space<vmem>>, vector<1x1x256x512xf32>,
    return
  }
  func.func @transform_0(%arg0: i32, %arg1: i32) -> (i32, i32, i32, i32) {
    %c0_i32 = arith.constant 0 : i32
    %c0_i32_0 = arith.constant 0 : i32
    %c0_i32_1 = arith.constant 0 : i32
    %c0_i32_2 = arith.constant 0 : i32
    return %arg0, %c0_i32, %c0_i32_0, %c0_i32_1 : i32, i32, i32, i32
  }
  func.func @transform_1(%arg0: i32, %arg1: i32) -> (i32, i32) {
    %c0_i32 = arith.constant 0 : i32
    %c0_i32_0 = arith.constant 0 : i32
    %c0_i32_1 = arith.constant 0 : i32
    return %c0_i32, %c0_i32_0 : i32, i32
  }
  func.func @transform_2(%arg0: i32, %arg1: i32) -> (i32, i32) {
    %c0_i32 = arith.constant 0 : i32
    %c0_i32_0 = arith.constant 0 : i32
    %c0_i32_1 = arith.constant 0 : i32
    return %c0_i32, %c0_i32_0 : i32, i32
  }
  func.func @transform_3(%arg0: i32, %arg1: i32) -> (i32, i32) {
    %c0_i32 = arith.constant 0 : i32
    %c0_i32_0 = arith.constant 0 : i32
    %c0_i32_1 = arith.constant 0 : i32
    return %c0_i32, %c0_i32_0 : i32, i32
  }
  func.func @transform_4(%arg0: i32, %arg1: i32) -> i32 {
    %c0_i32 = arith.constant 0 : i32
    %c0_i32_0 = arith.constant 0 : i32
    return %c0_i32 : i32
  }
  func.func @transform_5(%arg0: i32, %arg1: i32) -> (i32, i32) {
    %c0_i32 = arith.constant 0 : i32
    %c0_i32_0 = arith.constant 0 : i32
    return %arg1, %c0_i32 : i32, i32
  }
  func.func @transform_6(%arg0: i32, %arg1: i32) -> (i32, i32) {
    %c0_i32 = arith.constant 0 : i32
    %c0_i32_0 = arith.constant 0 : i32
    %c0_i32_1 = arith.constant 0 : i32
    return %c0_i32, %c0_i32_0 : i32, i32
  }
  func.func @transform_7(%arg0: i32, %arg1: i32) -> (i32, i32, i32, i32) {
    %c0_i32 = arith.constant 0 : i32
    %c0_i32_0 = arith.constant 0 : i32
    %c0_i32_1 = arith.constant 0 : i32
    return %arg0, %c0_i32, %arg1, %c0_i32_0 : i32, i32, i32, i32
  }
}

</mosaic_0001>

<llo_original>
// kernel: fixed_seg_net_forward.1
$region0: #{fixed_seg_net_forward.1}
  #allocation0 [shape = 'u32[]', space=smem, size = 0x4, offset = 0x4, fixed_abs, tag = 'smem constant byte address 0x4 - core index']
  #allocation1 [shape = 'u32[144,128]{1,0:T(1,128)}', space=vmem, size = 0x12000, scoped, tag = 'internal scratch']
  %s0 = inlined_call_operand.vmem [shape: f32[2,3,32,32], index: 0, kind: input, shape index: {}]
  %s1 = inlined_call_operand.vmem [shape: f32[32,32], index: 1, kind: input, shape index: {}]
  %s2 = inlined_call_operand.vmem [shape: f32[3,32], index: 2, kind: input, shape index: {}]
  %s3 = inlined_call_operand.vmem [shape: f32[1,32], index: 3, kind: input, shape index: {}]
  %s4 = inlined_call_operand.vmem [shape: f32[2], index: 4, kind: input, shape index: {}]
  %s5 = inlined_call_operand.vmem [shape: f32[512,1], index: 5, kind: input, shape index: {}]
  %s6 = inlined_call_operand.vmem [shape: f32[1,512], index: 6, kind: input, shape index: {}]
  %s7 = inlined_call_operand.hbm [shape: f32[2,1,512,512], index: 7, kind: output, shape index: {}]
  %s8 = sld [smem:[#allocation0]]
  $region65: #{fixed_seg_net_forward.1} parent=0
    _
  %s10 = ssub.s32 1, %s8
  %s11 = scalar_select 0, %s10, %s8
  $region1: #{fixed_seg_net_forward.1} parent=0
    #allocation2 [shape = 'u8[512]{0}', space=smem, size = 0x200, scoped, tag = 'input window, operand 4, single buffered']
    #allocation3 [shape = 's32[2]{0}', space=sflag, size = 0x8, scoped, tag = 'scoped memory for fixed_seg_net_forward.1']
    #allocation4 [shape = 's32[2]{0}', space=sflag, size = 0x8, scoped, tag = 'scoped memory for fixed_seg_net_forward.1']
    #allocation5 [shape = 'u8[1048576]{0}', space=vmem, size = 0x100000, scoped, tag = 'output window, operand 0']
    %12 = vsyncpa [#allocation4], 0
    %13 = vsyncpa [#allocation3], 0
    %s14 = scalar_lea.sflag [#allocation3], 1
    %15 = vsyncpa %s14, 0
    loop: start=0, step=1, limit=6
    $region2: #{fixed_seg_net_forward.1} parent=1 // loop_pre_header
      _
    $region3: #{fixed_seg_net_forward.1} parent=1 // loop_header
      %s17 = sphi 0, %s21
      %p18 = scmp.ge.s32.totalorder %s17, 6
      %s24 = sphi 0, %s36
      %s25 = sphi 0, %s32
      %s26 = sphi 0, %s24
      %s27 = sphi 0, %s25
      %s28 = sphi 0, %s26
      %s29 = sphi 0, %s27
      %s39 = sphi 0, %s41
      %s42 = sphi 0, %s39
      %s43 = sphi 0, %s42
      %s59 = sphi 0, %s43
      %s63 = sphi 0, %s63
      %s65 = sphi 0, %s63
      %s66 = sphi 0, %s65
      %s80 = sphi 0, %s66
      %s84 = sphi 0, %s84
      %s86 = sphi 0, %s84
      %s87 = sphi 0, %s86
      %s101 = sphi 0, %s87
      %s105 = sphi 0, %s105
      %s107 = sphi 0, %s105
      %s108 = sphi 0, %s107
      %s122 = sphi 0, %s108
      %s126 = sphi 0, %s126
      %s128 = sphi 0, %s126
      %s129 = sphi 0, %s128
      %s143 = sphi 0, %s129
      %s149 = sphi 0, %s151
      %s152 = sphi 0, %s149
      %s153 = sphi 0, %s152
      %s169 = sphi 0, %s153
      %s173 = sphi 0, %s173
      %s175 = sphi 0, %s173
      %s176 = sphi 0, %s175
      %s190 = sphi 0, %s176
      %s198 = sphi 0, %s200
      %s201 = sphi 0, %s198
      %s202 = sphi 0, %s201
      %s218 = sphi 0, %s202
    $region4: #{fixed_seg_net_forward.1} parent=1 // loop_header_branch
      %20 = sbr.rel (%p18) target = $region8
    $region5: #{fixed_seg_net_forward.1} parent=1 // loop_body
      %s22 = ssub.s32 %s17, 1
      %s23 = ssub.s32 %s17, 2
      %s30 = sadd.s32 1, %s25
      %p31 = scmp.ge.s32.totalorder %s30, 2
      %s32 = scalar_select %p31, 0, %s30
      %s33 = sadd.s32 1, %s24
      %s34 = scalar_select %p31, %s33, %s24
      %p35 = scmp.ge.s32.totalorder %s34, 2
      %s36 = scalar_select %p35, 0, %s34
      %s37 = ssub.s32 %s24, %s36
      %p38 = scmp.eq.s32.totalorder %s37, 0
      %s40 = sadd.s32 %s39, 1
      %s41 = scalar_select %p38, %s39, %s40
      %p44 = pneg %p38
      %p45 = scmp.eq.s32.totalorder %s17, 3
      %p46 = por %p44, %p45
      %p47 = scmp.ne.s32.totalorder %s39, %s42
      %p48 = scmp.eq.s32.totalorder %s17, 0
      %p49 = por %p47, %p48
      %p50 = scmp.ne.s32.totalorder %s39, %s42
      %p51 = scmp.eq.s32.totalorder %s22, 3
      %p52 = por %p50, %p51
      %p53 = scmp.ne.s32.totalorder %s42, %s43
      %p54 = scmp.eq.s32.totalorder %s22, 0
      %p55 = por %p53, %p54
      %p56 = scmp.ne.s32.totalorder %s42, %s43
      %p57 = scmp.eq.s32.totalorder %s23, 3
      %p58 = por %p56, %p57
      %p60 = scmp.ne.s32.totalorder %s43, %s59
      %p61 = scmp.eq.s32.totalorder %s23, 0
      %p62 = por %p60, %p61
      %s64 = sadd.s32 %s63, 1
      %p67 = scmp.eq.s32.totalorder %s17, 3
      %p68 = scmp.ne.s32.totalorder %s63, %s65
      %p69 = scmp.eq.s32.totalorder %s17, 0
      %p70 = por %p68, %p69
      %p71 = scmp.ne.s32.totalorder %s63, %s65
      %p72 = scmp.eq.s32.totalorder %s22, 3
      %p73 = por %p71, %p72
      %p74 = scmp.ne.s32.totalorder %s65, %s66
      %p75 = scmp.eq.s32.totalorder %s22, 0
      %p76 = por %p74, %p75
      %p77 = scmp.ne.s32.totalorder %s65, %s66
      %p78 = scmp.eq.s32.totalorder %s23, 3
      %p79 = por %p77, %p78
      %p81 = scmp.ne.s32.totalorder %s66, %s80
      %p82 = scmp.eq.s32.totalorder %s23, 0
      %p83 = por %p81, %p82
      %s85 = sadd.s32 %s84, 1
      %p88 = scmp.eq.s32.totalorder %s17, 3
      %p89 = scmp.ne.s32.totalorder %s84, %s86
      %p90 = scmp.eq.s32.totalorder %s17, 0
      %p91 = por %p89, %p90
      %p92 = scmp.ne.s32.totalorder %s84, %s86
      %p93 = scmp.eq.s32.totalorder %s22, 3
      %p94 = por %p92, %p93
      %p95 = scmp.ne.s32.totalorder %s86, %s87
      %p96 = scmp.eq.s32.totalorder %s22, 0
      %p97 = por %p95, %p96
      %p98 = scmp.ne.s32.totalorder %s86, %s87
      %p99 = scmp.eq.s32.totalorder %s23, 3
      %p100 = por %p98, %p99
      %p102 = scmp.ne.s32.totalorder %s87, %s101
      %p103 = scmp.eq.s32.totalorder %s23, 0
      %p104 = por %p102, %p103
      %s106 = sadd.s32 %s105, 1
      %p109 = scmp.eq.s32.totalorder %s17, 3
      %p110 = scmp.ne.s32.totalorder %s105, %s107
      %p111 = scmp.eq.s32.totalorder %s17, 0
      %p112 = por %p110, %p111
      %p113 = scmp.ne.s32.totalorder %s105, %s107
      %p114 = scmp.eq.s32.totalorder %s22, 3
      %p115 = por %p113, %p114
      %p116 = scmp.ne.s32.totalorder %s107, %s108
      %p117 = scmp.eq.s32.totalorder %s22, 0
      %p118 = por %p116, %p117
      %p119 = scmp.ne.s32.totalorder %s107, %s108
      %p120 = scmp.eq.s32.totalorder %s23, 3
      %p121 = por %p119, %p120
      %p123 = scmp.ne.s32.totalorder %s108, %s122
      %p124 = scmp.eq.s32.totalorder %s23, 0
      %p125 = por %p123, %p124
      %s127 = sadd.s32 %s126, 1
      %p130 = scmp.eq.s32.totalorder %s17, 3
      %p131 = scmp.ne.s32.totalorder %s126, %s128
      %p132 = scmp.eq.s32.totalorder %s17, 0
      %p133 = por %p131, %p132
      %p134 = scmp.ne.s32.totalorder %s126, %s128
      %p135 = scmp.eq.s32.totalorder %s22, 3
      %p136 = por %p134, %p135
      %p137 = scmp.ne.s32.totalorder %s128, %s129
      %p138 = scmp.eq.s32.totalorder %s22, 0
      %p139 = por %p137, %p138
      %p140 = scmp.ne.s32.totalorder %s128, %s129
      %p141 = scmp.eq.s32.totalorder %s23, 3
      %p142 = por %p140, %p141
      %p144 = scmp.ne.s32.totalorder %s129, %s143
      %p145 = scmp.eq.s32.totalorder %s23, 0
      %p146 = por %p144, %p145
      %s147 = ssub.s32 %s25, %s32
      %p148 = scmp.eq.s32.totalorder %s147, 0
      %s150 = sadd.s32 %s149, 1
      %s151 = scalar_select %p148, %s149, %s150
      %p154 = pneg %p148
      %p155 = scmp.eq.s32.totalorder %s17, 3
      %p156 = por %p154, %p155
      %p157 = scmp.ne.s32.totalorder %s149, %s152
      %p158 = scmp.eq.s32.totalorder %s17, 0
      %p159 = por %p157, %p158
      %p160 = scmp.ne.s32.totalorder %s149, %s152
      %p161 = scmp.eq.s32.totalorder %s22, 3
      %p162 = por %p160, %p161
      %p163 = scmp.ne.s32.totalorder %s152, %s153
      %p164 = scmp.eq.s32.totalorder %s22, 0
      %p165 = por %p163, %p164
      %p166 = scmp.ne.s32.totalorder %s152, %s153
      %p167 = scmp.eq.s32.totalorder %s23, 3
      %p168 = por %p166, %p167
      %p170 = scmp.ne.s32.totalorder %s153, %s169
      %p171 = scmp.eq.s32.totalorder %s23, 0
      %p172 = por %p170, %p171
      %s174 = sadd.s32 %s173, 1
      %p177 = scmp.eq.s32.totalorder %s17, 3
      %p178 = scmp.ne.s32.totalorder %s173, %s175
      %p179 = scmp.eq.s32.totalorder %s17, 0
      %p180 = por %p178, %p179
      %p181 = scmp.ne.s32.totalorder %s173, %s175
      %p182 = scmp.eq.s32.totalorder %s22, 3
      %p183 = por %p181, %p182
      %p184 = scmp.ne.s32.totalorder %s175, %s176
      %p185 = scmp.eq.s32.totalorder %s22, 0
      %p186 = por %p184, %p185
      %p187 = scmp.ne.s32.totalorder %s175, %s176
      %p188 = scmp.eq.s32.totalorder %s23, 3
      %p189 = por %p187, %p188
      %p191 = scmp.ne.s32.totalorder %s176, %s190
      %p192 = scmp.eq.s32.totalorder %s23, 0
      %p193 = por %p191, %p192
      %s194 = ssub.s32 %s24, %s36
      %s195 = ssub.s32 %s25, %s32
      %s196 = sor.u32 %s194, %s195
      %p197 = scmp.eq.s32.totalorder %s196, 0
      %s199 = sadd.s32 %s198, 1
      %s200 = scalar_select %p197, %s198, %s199
      %p203 = pneg %p197
      %p204 = scmp.eq.s32.totalorder %s17, 3
      %p205 = por %p203, %p204
      %p206 = scmp.ne.s32.totalorder %s198, %s201
      %p207 = scmp.eq.s32.totalorder %s17, 0
      %p208 = por %p206, %p207
      %p209 = scmp.ne.s32.totalorder %s198, %s201
      %p210 = scmp.eq.s32.totalorder %s22, 3
      %p211 = por %p209, %p210
      %p212 = scmp.ne.s32.totalorder %s201, %s202
      %p213 = scmp.eq.s32.totalorder %s22, 0
      %p214 = por %p212, %p213
      %p215 = scmp.ne.s32.totalorder %s201, %s202
      %p216 = scmp.eq.s32.totalorder %s23, 3
      %p217 = por %p215, %p216
      %p219 = scmp.ne.s32.totalorder %s202, %s218
      %p220 = scmp.eq.s32.totalorder %s23, 0
      %p221 = por %p219, %p220
      %p222 = scmp.le.s32.totalorder 1, %s17
      %p223 = scmp.lt.s32.totalorder %s17, 5
      %p224 = pnand %p222, %p223
      %p225 = pneg %p224
      // Predicated region
      $region9: #{fixed_seg_net_forward.1} parent=5 // pred_check
        _
      $region10: #{fixed_seg_net_forward.1} parent=5 // pred_check_branch
        %227 = sbr.rel (%p224) target = $region12
      $region11: #{fixed_seg_net_forward.1} parent=5 // pred_region
        %s228 = ssub.s32 %s17, 1
        // Predicated region
        $region13: #{fixed_seg_net_forward.1} parent=11 // pred_check
          %p229 = pneg %p76
        $region14: #{fixed_seg_net_forward.1} parent=11 // pred_check_branch
          %231 = sbr.rel (%p229) target = $region16
        $region15: #{fixed_seg_net_forward.1} parent=11 // pred_region
          _
        $region16: #{fixed_seg_net_forward.1} parent=11 // pred_fallthru
          _
        // Predicated region
        $region17: #{fixed_seg_net_forward.1} parent=11 // pred_check
          %p232 = pneg %p97
        $region18: #{fixed_seg_net_forward.1} parent=11 // pred_check_branch
          %234 = sbr.rel (%p232) target = $region20
        $region19: #{fixed_seg_net_forward.1} parent=11 // pred_region
          _
        $region20: #{fixed_seg_net_forward.1} parent=11 // pred_fallthru
          _
        // Predicated region
        $region21: #{fixed_seg_net_forward.1} parent=11 // pred_check
          %p235 = pneg %p118
        $region22: #{fixed_seg_net_forward.1} parent=11 // pred_check_branch
          %237 = sbr.rel (%p235) target = $region24
        $region23: #{fixed_seg_net_forward.1} parent=11 // pred_region
          _
        $region24: #{fixed_seg_net_forward.1} parent=11 // pred_fallthru
          _
        // Predicated region
        $region25: #{fixed_seg_net_forward.1} parent=11 // pred_check
          %p238 = pneg %p139
        $region26: #{fixed_seg_net_forward.1} parent=11 // pred_check_branch
          %240 = sbr.rel (%p238) target = $region28
        $region27: #{fixed_seg_net_forward.1} parent=11 // pred_region
          %s242 = ssub.s32 16, 16
          %243 = vsyncadd [#allocation4], %s242
          %s245 = sshll.u32 %s4, 4
          %s246 = int_to_ptr.vmem [resolvable:$true] %s245
          %248 = dma.vmem_to_smem %s246, 16, [#allocation2], [#allocation4]
        $region28: #{fixed_seg_net_forward.1} parent=11 // pred_fallthru
          _
        // Predicated region
        $region29: #{fixed_seg_net_forward.1} parent=11 // pred_check
          %p249 = pneg %p186
        $region30: #{fixed_seg_net_forward.1} parent=11 // pred_check_branch
          %251 = sbr.rel (%p249) target = $region32
        $region31: #{fixed_seg_net_forward.1} parent=11 // pred_region
          _
        $region32: #{fixed_seg_net_forward.1} parent=11 // pred_fallthru
          _
      $region12: #{fixed_seg_net_forward.1} parent=5 // pred_fallthru
        _
      %p252 = scmp.lt.s32.totalorder %s17, 4
      // Predicated region
      $region33: #{fixed_seg_net_forward.1} parent=5 // pred_check
        %p253 = pneg %p252
      $region34: #{fixed_seg_net_forward.1} parent=5 // pred_check_branch
        %255 = sbr.rel (%p253) target = $region36
      $region35: #{fixed_seg_net_forward.1} parent=5 // pred_region
        // Predicated region
        $region37: #{fixed_seg_net_forward.1} parent=35 // pred_check
          %p256 = pneg %p49
        $region38: #{fixed_seg_net_forward.1} parent=35 // pred_check_branch
          %258 = sbr.rel (%p256) target = $region40
        $region39: #{fixed_seg_net_forward.1} parent=35 // pred_region
          %p259 = scmp.lt.s32.totalorder %s24, 1
          %s260 = scalar_select %p259, %s24, 1
          %s261 = smul.addr %s260, 12
          %s262 = smul.addr %s261, 8
          %s263 = scalar_lea.vmem %s0, %s262
        $region40: #{fixed_seg_net_forward.1} parent=35 // pred_fallthru
          _
        // Predicated region
        $region41: #{fixed_seg_net_forward.1} parent=35 // pred_check
          %p264 = pneg %p159
        $region42: #{fixed_seg_net_forward.1} parent=35 // pred_check_branch
          %266 = sbr.rel (%p264) target = $region44
        $region43: #{fixed_seg_net_forward.1} parent=35 // pred_region
          %s267 = smul.u32 32, %s25
          %p268 = scmp.lt.s32.totalorder %s267, 63
          %s269 = scalar_select %p268, %s267, 63
          %s270 = smul.addr %s269, 8
          %s271 = scalar_lea.vmem %s5, %s270
          %s272 = smul.u32 32, %s25
        $region44: #{fixed_seg_net_forward.1} parent=35 // pred_fallthru
          _
      $region36: #{fixed_seg_net_forward.1} parent=5 // pred_fallthru
        _
      %p273 = scmp.le.s32.totalorder 1, %s17
      %p274 = scmp.lt.s32.totalorder %s17, 5
      %p275 = pnand %p273, %p274
      %p276 = pneg %p275
      // Predicated region
      $region45: #{fixed_seg_net_forward.1} parent=5 // pred_check
        _
      $region46: #{fixed_seg_net_forward.1} parent=5 // pred_check_branch
        %278 = sbr.rel (%p275) target = $region48
      $region47: #{fixed_seg_net_forward.1} parent=5 // pred_region
        %s279 = ssub.s32 %s17, 1
        // Predicated region
        $region49: #{fixed_seg_net_forward.1} parent=47 // pred_check
          %p280 = pneg %p139
        $region50: #{fixed_seg_net_forward.1} parent=47 // pred_check_branch
          %282 = sbr.rel (%p280) target = $region52
        $region51: #{fixed_seg_net_forward.1} parent=47 // pred_region
          %283 = dma.done [#allocation4], 16
        $region52: #{fixed_seg_net_forward.1} parent=47 // pred_fallthru
          _
        %284 = sfence
        %p285 = scmp.lt.s32.totalorder %s26, 1
        %s286 = scalar_select %p285, %s26, 1
        %s287 = smul.addr %s286, 12
        %s288 = smul.addr %s287, 8
        %s289 = scalar_lea.vmem %s0, %s288
        %p290 = pneg %p55
        %p291 = pneg %p52
        %p292 = pneg %p76
        %p293 = pneg %p73
        %p294 = pneg %p97
        %p295 = pneg %p94
        %p296 = pneg %p118
        %p297 = pneg %p115
        %p298 = pneg %p139
        %p299 = pneg %p136
        %s300 = smul.u32 32, %s27
        %p301 = scmp.lt.s32.totalorder %s300, 63
        %s302 = scalar_select %p301, %s300, 63
        %s303 = smul.addr %s302, 8
        %s304 = scalar_lea.vmem %s5, %s303
        %p305 = pneg %p165
        %p306 = pneg %p162
        %p307 = pneg %p186
        %p308 = pneg %p183
        %p309 = pneg %p214
        %p310 = pneg %p211
        %s311 = sand.u32 %s201, 1
        %s312 = scalar_lea.sflag [#allocation3], %s311
        %s313 = sand.u32 %s201, 1
        %s314 = smul.addr %s313, 1024
        %s315 = scalar_lea.vmem [#allocation5], %s314
        %p316 = scmp.lt.s32.totalorder %s26, 1
        %s317 = scalar_select %p316, %s26, 1
        %s318 = smul.addr %s317, 12
        %s319 = smul.addr %s318, 8
        %s320 = scalar_lea.vmem %s0, %s319
        %s321 = smul.u32 32, %s27
        %p322 = scmp.lt.s32.totalorder %s321, 63
        %s323 = scalar_select %p322, %s321, 63
        %s324 = smul.addr %s323, 8
        %s325 = scalar_lea.vmem %s5, %s324
        %s326 = smul.u32 32, %s27
        %s327 = smul.u32 32, %s27
        %v328 = vld [vmem:[%s1] sm:$0xff]
        %v329 = vld [vmem:[%s1 + $0x8] sm:$0xff]
        %v330 = vld [vmem:[%s1 + $0x10] sm:$0xff]
        %v331 = vld [vmem:[%s1 + $0x18] sm:$0xff]
        %v332 = vld [vmem:[%s3] sm:$0x1]
        %v333 = vld [vmem:[%s320] sm:$0xff]
        %v334 = vld [vmem:[%s320 + $0x8] sm:$0xff]
        %v335 = vld [vmem:[%s320 + $0x10] sm:$0xff]
        %v336 = vld [vmem:[%s320 + $0x18] sm:$0xff]
        %v337 = vmul.f32 %v333, %v328
        %v338 = vmul.f32 %v334, %v329
        %v339 = vmul.f32 %v335, %v330
        %v340 = vmul.f32 %v336, %v331
        %vm341 = vcmask 261120
        %v342 = vsel %vm341, %v337, 0.0
        %v343 = vsel %vm341, %v338, 0.0
        %v344 = vadd.f32 %v342, %v343
        %v345 = vsel %vm341, %v339, 0.0
        %v346 = vadd.f32 %v344, %v345
        %v347 = vsel %vm341, %v340, 0.0
        %v348 = vadd.f32 %v346, %v347
        %349 = vadd.xlane.f32.xlu0 %v348
        %v350 = vpop.xlane.xlu0 %349
        %v351 = vrot.slane %v350, 4
        %v352 = vadd.f32 %v350, %v351
        %v353 = vrot.slane %v352, 2
        %v354 = vadd.f32 %v352, %v353
        %v355 = vrot.slane %v354, 1
        %v356 = vadd.f32 %v354, %v355
        %s357 = vtos %v356
        %v358 = vld [vmem:[%s2] sm:$0x1]
        %v359 = vstv %s357
        %v360 = vmul.f32 %v359, %v358
        %v361 = vadd.f32 %v332, %v360
        %s362 = scalar_lea.vmem %s320, 32
        %v363 = vld [vmem:[%s362] sm:$0xff]
        %v364 = vld [vmem:[%s362 + $0x8] sm:$0xff]
        %v365 = vld [vmem:[%s362 + $0x10] sm:$0xff]
        %v366 = vld [vmem:[%s362 + $0x18] sm:$0xff]
        %v367 = vmul.f32 %v363, %v328
        %v368 = vmul.f32 %v364, %v329
        %v369 = vmul.f32 %v365, %v330
        %v370 = vmul.f32 %v366, %v331
        %v371 = vsel %vm341, %v367, 0.0
        %v372 = vsel %vm341, %v368, 0.0
        %v373 = vadd.f32 %v371, %v372
        %v374 = vsel %vm341, %v369, 0.0
        %v375 = vadd.f32 %v373, %v374
        %v376 = vsel %vm341, %v370, 0.0
        %v377 = vadd.f32 %v375, %v376
        %378 = vadd.xlane.f32.xlu0 %v377
        %v379 = vpop.xlane.xlu0 %378
        %v380 = vrot.slane %v379, 4
        %v381 = vadd.f32 %v379, %v380
        %v382 = vrot.slane %v381, 2
        %v383 = vadd.f32 %v381, %v382
        %v384 = vrot.slane %v383, 1
        %v385 = vadd.f32 %v383, %v384
        %s386 = vtos %v385
        %v387 = vld [vmem:[%s2 + $0x1] sm:$0x1]
        %v388 = vstv %s386
        %v389 = vmul.f32 %v388, %v387
        %v390 = vadd.f32 %v361, %v389
        %s391 = scalar_lea.vmem %s320, 64
        %v392 = vld [vmem:[%s391] sm:$0xff]
        %v393 = vld [vmem:[%s391 + $0x8] sm:$0xff]
        %v394 = vld [vmem:[%s391 + $0x10] sm:$0xff]
        %v395 = vld [vmem:[%s391 + $0x18] sm:$0xff]
        %v396 = vmul.f32 %v392, %v328
        %v397 = vmul.f32 %v393, %v329
        %v398 = vmul.f32 %v394, %v330
        %v399 = vmul.f32 %v395, %v331
        %v400 = vsel %vm341, %v396, 0.0
        %v401 = vsel %vm341, %v397, 0.0
        %v402 = vadd.f32 %v400, %v401
        %v403 = vsel %vm341, %v398, 0.0
        %v404 = vadd.f32 %v402, %v403
        %v405 = vsel %vm341, %v399, 0.0
        %v406 = vadd.f32 %v404, %v405
        %407 = vadd.xlane.f32.xlu0 %v406
        %v408 = vpop.xlane.xlu0 %407
        %v409 = vrot.slane %v408, 4
        %v410 = vadd.f32 %v408, %v409
        %v411 = vrot.slane %v410, 2
        %v412 = vadd.f32 %v410, %v411
        %v413 = vrot.slane %v412, 1
        %v414 = vadd.f32 %v412, %v413
        %s415 = vtos %v414
        %v416 = vld [vmem:[%s2 + $0x2] sm:$0x1]
        %v417 = vstv %s415
        %v418 = vmul.f32 %v417, %v416
        %v419 = vadd.f32 %v390, %v418
        %vm420 = vcmask 253952
        %v421 = vsel %vm420, %v419, 0.0
        %422 = vadd.xlane.f32.xlu0 %v421
        %v423 = vpop.xlane.xlu0 %422
        %v424 = vrot.slane %v423, 4
        %v425 = vadd.f32 %v423, %v424
        %v426 = vrot.slane %v425, 2
        %v427 = vadd.f32 %v425, %v426
        %v428 = vrot.slane %v427, 1
        %v429 = vadd.f32 %v427, %v428
        %s430 = vtos %v429
        %s431 = sld [smem:[#allocation2]]
        %s432 = smul.f32 %s431, 32768.0
        %s433 = smul.f32 %s430, %s432
        %v434 = vld [vmem:[%s325] sm:$0xff]
        %v435 = vld [vmem:[%s325 + $0x8] sm:$0xff]
        %v436 = vld [vmem:[%s325 + $0x10] sm:$0xff]
        %v437 = vld [vmem:[%s325 + $0x18] sm:$0xff]
        %v438 = vld [vmem:[%s325 + $0x20] sm:$0xff]
        %v439 = vld [vmem:[%s325 + $0x28] sm:$0xff]
        %v440 = vld [vmem:[%s325 + $0x30] sm:$0xff]
        %v441 = vld [vmem:[%s325 + $0x38] sm:$0xff]
        %v442 = vld [vmem:[%s325 + $0x40] sm:$0xff]
        %v443 = vld [vmem:[%s325 + $0x48] sm:$0xff]
        %v444 = vld [vmem:[%s325 + $0x50] sm:$0xff]
        %v445 = vld [vmem:[%s325 + $0x58] sm:$0xff]
        %v446 = vld [vmem:[%s325 + $0x60] sm:$0xff]
        %v447 = vld [vmem:[%s325 + $0x68] sm:$0xff]
        %v448 = vld [vmem:[%s325 + $0x70] sm:$0xff]
        %v449 = vld [vmem:[%s325 + $0x78] sm:$0xff]
        %v450 = vld [vmem:[%s325 + $0x80] sm:$0xff]
        %v451 = vld [vmem:[%s325 + $0x88] sm:$0xff]
        %v452 = vld [vmem:[%s325 + $0x90] sm:$0xff]
        %v453 = vld [vmem:[%s325 + $0x98] sm:$0xff]
        %v454 = vld [vmem:[%s325 + $0xa0] sm:$0xff]
        %v455 = vld [vmem:[%s325 + $0xa8] sm:$0xff]
        %v456 = vld [vmem:[%s325 + $0xb0] sm:$0xff]
        %v457 = vld [vmem:[%s325 + $0xb8] sm:$0xff]
        %v458 = vld [vmem:[%s325 + $0xc0] sm:$0xff]
        %v459 = vld [vmem:[%s325 + $0xc8] sm:$0xff]
        %v460 = vld [vmem:[%s325 + $0xd0] sm:$0xff]
        %v461 = vld [vmem:[%s325 + $0xd8] sm:$0xff]
        %v462 = vld [vmem:[%s325 + $0xe0] sm:$0xff]
        %v463 = vld [vmem:[%s325 + $0xe8] sm:$0xff]
        %v464 = vld [vmem:[%s325 + $0xf0] sm:$0xff]
        %v465 = vld [vmem:[%s325 + $0xf8] sm:$0xff]
        %467 = vset.pattern.permute.xlu0 0
        %468 = vperm.xlu0 %467, %v434
        %v469 = vpop.permute.xlu0 %468
        %472 = vset.pattern.permute.xlu0 0
        %473 = vperm.xlu0 %472, %v435
        %v474 = vpop.permute.xlu0 %473
        %477 = vset.pattern.permute.xlu0 0
        %478 = vperm.xlu0 %477, %v436
        %v479 = vpop.permute.xlu0 %478
        %482 = vset.pattern.permute.xlu0 0
        %483 = vperm.xlu0 %482, %v437
        %v484 = vpop.permute.xlu0 %483
        %487 = vset.pattern.permute.xlu0 0
        %488 = vperm.xlu0 %487, %v438
        %v489 = vpop.permute.xlu0 %488
        %492 = vset.pattern.permute.xlu0 0
        %493 = vperm.xlu0 %492, %v439
        %v494 = vpop.permute.xlu0 %493
        %497 = vset.pattern.permute.xlu0 0
        %498 = vperm.xlu0 %497, %v440
        %v499 = vpop.permute.xlu0 %498
        %502 = vset.pattern.permute.xlu0 0
        %503 = vperm.xlu0 %502, %v441
        %v504 = vpop.permute.xlu0 %503
        %507 = vset.pattern.permute.xlu0 0
        %508 = vperm.xlu0 %507, %v442
        %v509 = vpop.permute.xlu0 %508
        %512 = vset.pattern.permute.xlu0 0
        %513 = vperm.xlu0 %512, %v443
        %v514 = vpop.permute.xlu0 %513
        %517 = vset.pattern.permute.xlu0 0
        %518 = vperm.xlu0 %517, %v444
        %v519 = vpop.permute.xlu0 %518
        %522 = vset.pattern.permute.xlu0 0
        %523 = vperm.xlu0 %522, %v445
        %v524 = vpop.permute.xlu0 %523
        %527 = vset.pattern.permute.xlu0 0
        %528 = vperm.xlu0 %527, %v446
        %v529 = vpop.permute.xlu0 %528
        %532 = vset.pattern.permute.xlu0 0
        %533 = vperm.xlu0 %532, %v447
        %v534 = vpop.permute.xlu0 %533
        %537 = vset.pattern.permute.xlu0 0
        %538 = vperm.xlu0 %537, %v448
        %v539 = vpop.permute.xlu0 %538
        %542 = vset.pattern.permute.xlu0 0
        %543 = vperm.xlu0 %542, %v449
        %v544 = vpop.permute.xlu0 %543
        %547 = vset.pattern.permute.xlu0 0
        %548 = vperm.xlu0 %547, %v450
        %v549 = vpop.permute.xlu0 %548
        %552 = vset.pattern.permute.xlu0 0
        %553 = vperm.xlu0 %552, %v451
        %v554 = vpop.permute.xlu0 %553
        %557 = vset.pattern.permute.xlu0 0
        %558 = vperm.xlu0 %557, %v452
        %v559 = vpop.permute.xlu0 %558
        %562 = vset.pattern.permute.xlu0 0
        %563 = vperm.xlu0 %562, %v453
        %v564 = vpop.permute.xlu0 %563
        %567 = vset.pattern.permute.xlu0 0
        %568 = vperm.xlu0 %567, %v454
        %v569 = vpop.permute.xlu0 %568
        %572 = vset.pattern.permute.xlu0 0
        %573 = vperm.xlu0 %572, %v455
        %v574 = vpop.permute.xlu0 %573
        %577 = vset.pattern.permute.xlu0 0
        %578 = vperm.xlu0 %577, %v456
        %v579 = vpop.permute.xlu0 %578
        %582 = vset.pattern.permute.xlu0 0
        %583 = vperm.xlu0 %582, %v457
        %v584 = vpop.permute.xlu0 %583
        %587 = vset.pattern.permute.xlu0 0
        %588 = vperm.xlu0 %587, %v458
        %v589 = vpop.permute.xlu0 %588
        %592 = vset.pattern.permute.xlu0 0
        %593 = vperm.xlu0 %592, %v459
        %v594 = vpop.permute.xlu0 %593
        %597 = vset.pattern.permute.xlu0 0
        %598 = vperm.xlu0 %597, %v460
        %v599 = vpop.permute.xlu0 %598
        %602 = vset.pattern.permute.xlu0 0
        %603 = vperm.xlu0 %602, %v461
        %v604 = vpop.permute.xlu0 %603
        %607 = vset.pattern.permute.xlu0 0
        %608 = vperm.xlu0 %607, %v462
        %v609 = vpop.permute.xlu0 %608
        %612 = vset.pattern.permute.xlu0 0
        %613 = vperm.xlu0 %612, %v463
        %v614 = vpop.permute.xlu0 %613
        %617 = vset.pattern.permute.xlu0 0
        %618 = vperm.xlu0 %617, %v464
        %v619 = vpop.permute.xlu0 %618
        %622 = vset.pattern.permute.xlu0 0
        %623 = vperm.xlu0 %622, %v465
        %v624 = vpop.permute.xlu0 %623
        %v626 = vld [vmem:[%s6] sm:$0xf]
        %v628 = vlaneseq
        %v629 = vshrl.u32 %v628, 7
        %v630 = vsub.s32 0, %v629
        %v631 = vrot.slane %v626, %v630
        %v632 = vlaneseq
        %v633 = vshrl.u32 %v632, 7
        %v634 = vsub.s32 1, %v633
        %v635 = vrot.slane %v626, %v634
        %v636 = vlaneseq
        %v637 = vshrl.u32 %v636, 7
        %v638 = vsub.s32 2, %v637
        %v639 = vrot.slane %v626, %v638
        %v640 = vlaneseq
        %v641 = vshrl.u32 %v640, 7
        %v642 = vsub.s32 3, %v641
        %v643 = vrot.slane %v626, %v642
        %v648 = vstv %s433
        %v649 = vmul.f32 %v648, %v469
        %v650 = vmul.f32 %v648, %v474
        %v651 = vmul.f32 %v648, %v479
        %v652 = vmul.f32 %v648, %v484
        %v653 = vmul.f32 %v648, %v489
        %v654 = vmul.f32 %v648, %v494
        %v655 = vmul.f32 %v648, %v499
        %v656 = vmul.f32 %v648, %v504
        %v657 = vmul.f32 %v648, %v509
        %v658 = vmul.f32 %v648, %v514
        %v659 = vmul.f32 %v648, %v519
        %v660 = vmul.f32 %v648, %v524
        %v661 = vmul.f32 %v648, %v529
        %v662 = vmul.f32 %v648, %v534
        %v663 = vmul.f32 %v648, %v539
        %v664 = vmul.f32 %v648, %v544
        %v665 = vmul.f32 %v648, %v549
        %v666 = vmul.f32 %v648, %v554
        %v667 = vmul.f32 %v648, %v559
        %v668 = vmul.f32 %v648, %v564
        %v669 = vmul.f32 %v648, %v569
        %v670 = vmul.f32 %v648, %v574
        %v671 = vmul.f32 %v648, %v579
        %v672 = vmul.f32 %v648, %v584
        %v673 = vmul.f32 %v648, %v589
        %v674 = vmul.f32 %v648, %v594
        %v675 = vmul.f32 %v648, %v599
        %v676 = vmul.f32 %v648, %v604
        %v677 = vmul.f32 %v648, %v609
        %v678 = vmul.f32 %v648, %v614
        %v679 = vmul.f32 %v648, %v619
        %v680 = vmul.f32 %v648, %v624
        %v681 = vmul.f32 %v649, %v631
        %v682 = vmul.f32 %v649, %v635
        %v683 = vmul.f32 %v649, %v639
        %v684 = vmul.f32 %v649, %v643
        %v685 = vmul.f32 %v650, %v631
        %v686 = vmul.f32 %v650, %v635
        %v687 = vmul.f32 %v650, %v639
        %v688 = vmul.f32 %v650, %v643
        %v689 = vmul.f32 %v651, %v631
        %v690 = vmul.f32 %v651, %v635
        %v691 = vmul.f32 %v651, %v639
        %v692 = vmul.f32 %v651, %v643
        %v693 = vmul.f32 %v652, %v631
        %v694 = vmul.f32 %v652, %v635
        %v695 = vmul.f32 %v652, %v639
        %v696 = vmul.f32 %v652, %v643
        %v697 = vmul.f32 %v653, %v631
        %v698 = vmul.f32 %v653, %v635
        %v699 = vmul.f32 %v653, %v639
        %v700 = vmul.f32 %v653, %v643
        %v701 = vmul.f32 %v654, %v631
        %v702 = vmul.f32 %v654, %v635
        %v703 = vmul.f32 %v654, %v639
        %v704 = vmul.f32 %v654, %v643
        %v705 = vmul.f32 %v655, %v631
        %v706 = vmul.f32 %v655, %v635
        %v707 = vmul.f32 %v655, %v639
        %v708 = vmul.f32 %v655, %v643
        %v709 = vmul.f32 %v656, %v631
        %v710 = vmul.f32 %v656, %v635
        %v711 = vmul.f32 %v656, %v639
        %v712 = vmul.f32 %v656, %v643
        %v713 = vmul.f32 %v657, %v631
        %v714 = vmul.f32 %v657, %v635
        %v715 = vmul.f32 %v657, %v639
        %v716 = vmul.f32 %v657, %v643
        %v717 = vmul.f32 %v658, %v631
        %v718 = vmul.f32 %v658, %v635
        %v719 = vmul.f32 %v658, %v639
        %v720 = vmul.f32 %v658, %v643
        %v721 = vmul.f32 %v659, %v631
        %v722 = vmul.f32 %v659, %v635
        %v723 = vmul.f32 %v659, %v639
        %v724 = vmul.f32 %v659, %v643
        %v725 = vmul.f32 %v660, %v631
        %v726 = vmul.f32 %v660, %v635
        %v727 = vmul.f32 %v660, %v639
        %v728 = vmul.f32 %v660, %v643
        %v729 = vmul.f32 %v661, %v631
        %v730 = vmul.f32 %v661, %v635
        %v731 = vmul.f32 %v661, %v639
        %v732 = vmul.f32 %v661, %v643
        %v733 = vmul.f32 %v662, %v631
        %v734 = vmul.f32 %v662, %v635
        %v735 = vmul.f32 %v662, %v639
        %v736 = vmul.f32 %v662, %v643
        %v737 = vmul.f32 %v663, %v631
        %v738 = vmul.f32 %v663, %v635
        %v739 = vmul.f32 %v663, %v639
        %v740 = vmul.f32 %v663, %v643
        %v741 = vmul.f32 %v664, %v631
        %v742 = vmul.f32 %v664, %v635
        %v743 = vmul.f32 %v664, %v639
        %v744 = vmul.f32 %v664, %v643
        %v745 = vmul.f32 %v665, %v631
        %v746 = vmul.f32 %v665, %v635
        %v747 = vmul.f32 %v665, %v639
        %v748 = vmul.f32 %v665, %v643
        %v749 = vmul.f32 %v666, %v631
        %v750 = vmul.f32 %v666, %v635
        %v751 = vmul.f32 %v666, %v639
        %v752 = vmul.f32 %v666, %v643
        %v753 = vmul.f32 %v667, %v631
        %v754 = vmul.f32 %v667, %v635
        %v755 = vmul.f32 %v667, %v639
        %v756 = vmul.f32 %v667, %v643
        %v757 = vmul.f32 %v668, %v631
        %v758 = vmul.f32 %v668, %v635
        %v759 = vmul.f32 %v668, %v639
        %v760 = vmul.f32 %v668, %v643
        %v761 = vmul.f32 %v669, %v631
        %v762 = vmul.f32 %v669, %v635
        %v763 = vmul.f32 %v669, %v639
        %v764 = vmul.f32 %v669, %v643
        %v765 = vmul.f32 %v670, %v631
        %v766 = vmul.f32 %v670, %v635
        %v767 = vmul.f32 %v670, %v639
        %v768 = vmul.f32 %v670, %v643
        %v769 = vmul.f32 %v671, %v631
        %v770 = vmul.f32 %v671, %v635
        %v771 = vmul.f32 %v671, %v639
        %v772 = vmul.f32 %v671, %v643
        %v773 = vmul.f32 %v672, %v631
        %v774 = vmul.f32 %v672, %v635
        %v775 = vmul.f32 %v672, %v639
        %v776 = vmul.f32 %v672, %v643
        %v777 = vmul.f32 %v673, %v631
        %v778 = vmul.f32 %v673, %v635
        %v779 = vmul.f32 %v673, %v639
        %v780 = vmul.f32 %v673, %v643
        %v781 = vmul.f32 %v674, %v631
        %v782 = vmul.f32 %v674, %v635
        %v783 = vmul.f32 %v674, %v639
        %v784 = vmul.f32 %v674, %v643
        %v785 = vmul.f32 %v675, %v631
        %v786 = vmul.f32 %v675, %v635
        %v787 = vmul.f32 %v675, %v639
        %v788 = vmul.f32 %v675, %v643
        %v789 = vmul.f32 %v676, %v631
        %v790 = vmul.f32 %v676, %v635
        %v791 = vmul.f32 %v676, %v639
        %v792 = vmul.f32 %v676, %v643
        %v793 = vmul.f32 %v677, %v631
        %v794 = vmul.f32 %v677, %v635
        %v795 = vmul.f32 %v677, %v639
        %v796 = vmul.f32 %v677, %v643
        %v797 = vmul.f32 %v678, %v631
        %v798 = vmul.f32 %v678, %v635
        %v799 = vmul.f32 %v678, %v639
        %v800 = vmul.f32 %v678, %v643
        %v801 = vmul.f32 %v679, %v631
        %v802 = vmul.f32 %v679, %v635
        %v803 = vmul.f32 %v679, %v639
        %v804 = vmul.f32 %v679, %v643
        %v805 = vmul.f32 %v680, %v631
        %v806 = vmul.f32 %v680, %v635
        %v807 = vmul.f32 %v680, %v639
        %v808 = vmul.f32 %v680, %v643
        %s809 = sld [smem:[#allocation2 + $0x1]]
        %v810 = vstv %s809
        %v811 = vadd.f32 %v681, %v810
        %v812 = vadd.f32 %v682, %v810
        %v813 = vadd.f32 %v683, %v810
        %v814 = vadd.f32 %v684, %v810
        %v815 = vadd.f32 %v685, %v810
        %v816 = vadd.f32 %v686, %v810
        %v817 = vadd.f32 %v687, %v810
        %v818 = vadd.f32 %v688, %v810
        %v819 = vadd.f32 %v689, %v810
        %v820 = vadd.f32 %v690, %v810
        %v821 = vadd.f32 %v691, %v810
        %v822 = vadd.f32 %v692, %v810
        %v823 = vadd.f32 %v693, %v810
        %v824 = vadd.f32 %v694, %v810
        %v825 = vadd.f32 %v695, %v810
        %v826 = vadd.f32 %v696, %v810
        %v827 = vadd.f32 %v697, %v810
        %v828 = vadd.f32 %v698, %v810
        %v829 = vadd.f32 %v699, %v810
        %v830 = vadd.f32 %v700, %v810
        %v831 = vadd.f32 %v701, %v810
        %v832 = vadd.f32 %v702, %v810
        %v833 = vadd.f32 %v703, %v810
        %v834 = vadd.f32 %v704, %v810
        %v835 = vadd.f32 %v705, %v810
        %v836 = vadd.f32 %v706, %v810
        %v837 = vadd.f32 %v707, %v810
        %v838 = vadd.f32 %v708, %v810
        %v839 = vadd.f32 %v709, %v810
        %v840 = vadd.f32 %v710, %v810
        %v841 = vadd.f32 %v711, %v810
        %v842 = vadd.f32 %v712, %v810
        %v843 = vadd.f32 %v713, %v810
        %v844 = vadd.f32 %v714, %v810
        %v845 = vadd.f32 %v715, %v810
        %v846 = vadd.f32 %v716, %v810
        %v847 = vadd.f32 %v717, %v810
        %v848 = vadd.f32 %v718, %v810
        %v849 = vadd.f32 %v719, %v810
        %v850 = vadd.f32 %v720, %v810
        %v851 = vadd.f32 %v721, %v810
        %v852 = vadd.f32 %v722, %v810
        %v853 = vadd.f32 %v723, %v810
        %v854 = vadd.f32 %v724, %v810
        %v855 = vadd.f32 %v725, %v810
        %v856 = vadd.f32 %v726, %v810
        %v857 = vadd.f32 %v727, %v810
        %v858 = vadd.f32 %v728, %v810
        %v859 = vadd.f32 %v729, %v810
        %v860 = vadd.f32 %v730, %v810
        %v861 = vadd.f32 %v731, %v810
        %v862 = vadd.f32 %v732, %v810
        %v863 = vadd.f32 %v733, %v810
        %v864 = vadd.f32 %v734, %v810
        %v865 = vadd.f32 %v735, %v810
        %v866 = vadd.f32 %v736, %v810
        %v867 = vadd.f32 %v737, %v810
        %v868 = vadd.f32 %v738, %v810
        %v869 = vadd.f32 %v739, %v810
        %v870 = vadd.f32 %v740, %v810
        %v871 = vadd.f32 %v741, %v810
        %v872 = vadd.f32 %v742, %v810
        %v873 = vadd.f32 %v743, %v810
        %v874 = vadd.f32 %v744, %v810
        %v875 = vadd.f32 %v745, %v810
        %v876 = vadd.f32 %v746, %v810
        %v877 = vadd.f32 %v747, %v810
        %v878 = vadd.f32 %v748, %v810
        %v879 = vadd.f32 %v749, %v810
        %v880 = vadd.f32 %v750, %v810
        %v881 = vadd.f32 %v751, %v810
        %v882 = vadd.f32 %v752, %v810
        %v883 = vadd.f32 %v753, %v810
        %v884 = vadd.f32 %v754, %v810
        %v885 = vadd.f32 %v755, %v810
        %v886 = vadd.f32 %v756, %v810
        %v887 = vadd.f32 %v757, %v810
        %v888 = vadd.f32 %v758, %v810
        %v889 = vadd.f32 %v759, %v810
        %v890 = vadd.f32 %v760, %v810
        %v891 = vadd.f32 %v761, %v810
        %v892 = vadd.f32 %v762, %v810
        %v893 = vadd.f32 %v763, %v810
        %v894 = vadd.f32 %v764, %v810
        %v895 = vadd.f32 %v765, %v810
        %v896 = vadd.f32 %v766, %v810
        %v897 = vadd.f32 %v767, %v810
        %v898 = vadd.f32 %v768, %v810
        %v899 = vadd.f32 %v769, %v810
        %v900 = vadd.f32 %v770, %v810
        %v901 = vadd.f32 %v771, %v810
        %v902 = vadd.f32 %v772, %v810
        %v903 = vadd.f32 %v773, %v810
        %v904 = vadd.f32 %v774, %v810
        %v905 = vadd.f32 %v775, %v810
        %v906 = vadd.f32 %v776, %v810
        %v907 = vadd.f32 %v777, %v810
        %v908 = vadd.f32 %v778, %v810
        %v909 = vadd.f32 %v779, %v810
        %v910 = vadd.f32 %v780, %v810
        %v911 = vadd.f32 %v781, %v810
        %v912 = vadd.f32 %v782, %v810
        %v913 = vadd.f32 %v783, %v810
        %v914 = vadd.f32 %v784, %v810
        %v915 = vadd.f32 %v785, %v810
        %v916 = vadd.f32 %v786, %v810
        %v917 = vadd.f32 %v787, %v810
        %v918 = vadd.f32 %v788, %v810
        %v919 = vadd.f32 %v789, %v810
        %v920 = vadd.f32 %v790, %v810
        %v921 = vadd.f32 %v791, %v810
        %v922 = vadd.f32 %v792, %v810
        %v923 = vadd.f32 %v793, %v810
        %v924 = vadd.f32 %v794, %v810
        %v925 = vadd.f32 %v795, %v810
        %v926 = vadd.f32 %v796, %v810
        %v927 = vadd.f32 %v797, %v810
        %v928 = vadd.f32 %v798, %v810
        %v929 = vadd.f32 %v799, %v810
        %v930 = vadd.f32 %v800, %v810
        %v931 = vadd.f32 %v801, %v810
        %v932 = vadd.f32 %v802, %v810
        %v933 = vadd.f32 %v803, %v810
        %v934 = vadd.f32 %v804, %v810
        %v935 = vadd.f32 %v805, %v810
        %v936 = vadd.f32 %v806, %v810
        %v937 = vadd.f32 %v807, %v810
        %v938 = vadd.f32 %v808, %v810
        %939 = vst [vmem:[%s315] sm:$0xff] %v811
        %940 = vst [vmem:[%s315 + $0x8] sm:$0xff] %v812
        %941 = vst [vmem:[%s315 + $0x10] sm:$0xff] %v813
        %942 = vst [vmem:[%s315 + $0x18] sm:$0xff] %v814
        %943 = vst [vmem:[%s315 + $0x20] sm:$0xff] %v815
        %944 = vst [vmem:[%s315 + $0x28] sm:$0xff] %v816
        %945 = vst [vmem:[%s315 + $0x30] sm:$0xff] %v817
        %946 = vst [vmem:[%s315 + $0x38] sm:$0xff] %v818
        %947 = vst [vmem:[%s315 + $0x40] sm:$0xff] %v819
        %948 = vst [vmem:[%s315 + $0x48] sm:$0xff] %v820
        %949 = vst [vmem:[%s315 + $0x50] sm:$0xff] %v821
        %950 = vst [vmem:[%s315 + $0x58] sm:$0xff] %v822
        %951 = vst [vmem:[%s315 + $0x60] sm:$0xff] %v823
        %952 = vst [vmem:[%s315 + $0x68] sm:$0xff] %v824
        %953 = vst [vmem:[%s315 + $0x70] sm:$0xff] %v825
        %954 = vst [vmem:[%s315 + $0x78] sm:$0xff] %v826
        %955 = vst [vmem:[%s315 + $0x80] sm:$0xff] %v827
        %956 = vst [vmem:[%s315 + $0x88] sm:$0xff] %v828
        %957 = vst [vmem:[%s315 + $0x90] sm:$0xff] %v829
        %958 = vst [vmem:[%s315 + $0x98] sm:$0xff] %v830
        %959 = vst [vmem:[%s315 + $0xa0] sm:$0xff] %v831
        %960 = vst [vmem:[%s315 + $0xa8] sm:$0xff] %v832
        %961 = vst [vmem:[%s315 + $0xb0] sm:$0xff] %v833
        %962 = vst [vmem:[%s315 + $0xb8] sm:$0xff] %v834
        %963 = vst [vmem:[%s315 + $0xc0] sm:$0xff] %v835
        %964 = vst [vmem:[%s315 + $0xc8] sm:$0xff] %v836
        %965 = vst [vmem:[%s315 + $0xd0] sm:$0xff] %v837
        %966 = vst [vmem:[%s315 + $0xd8] sm:$0xff] %v838
        %967 = vst [vmem:[%s315 + $0xe0] sm:$0xff] %v839
        %968 = vst [vmem:[%s315 + $0xe8] sm:$0xff] %v840
        %969 = vst [vmem:[%s315 + $0xf0] sm:$0xff] %v841
        %970 = vst [vmem:[%s315 + $0xf8] sm:$0xff] %v842
        %971 = vst [vmem:[%s315 + $0x100] sm:$0xff] %v843
        %972 = vst [vmem:[%s315 + $0x108] sm:$0xff] %v844
        %973 = vst [vmem:[%s315 + $0x110] sm:$0xff] %v845
        %974 = vst [vmem:[%s315 + $0x118] sm:$0xff] %v846
        %975 = vst [vmem:[%s315 + $0x120] sm:$0xff] %v847
        %976 = vst [vmem:[%s315 + $0x128] sm:$0xff] %v848
        %977 = vst [vmem:[%s315 + $0x130] sm:$0xff] %v849
        %978 = vst [vmem:[%s315 + $0x138] sm:$0xff] %v850
        %979 = vst [vmem:[%s315 + $0x140] sm:$0xff] %v851
        %980 = vst [vmem:[%s315 + $0x148] sm:$0xff] %v852
        %981 = vst [vmem:[%s315 + $0x150] sm:$0xff] %v853
        %982 = vst [vmem:[%s315 + $0x158] sm:$0xff] %v854
        %983 = vst [vmem:[%s315 + $0x160] sm:$0xff] %v855
        %984 = vst [vmem:[%s315 + $0x168] sm:$0xff] %v856
        %985 = vst [vmem:[%s315 + $0x170] sm:$0xff] %v857
        %986 = vst [vmem:[%s315 + $0x178] sm:$0xff] %v858
        %987 = vst [vmem:[%s315 + $0x180] sm:$0xff] %v859
        %988 = vst [vmem:[%s315 + $0x188] sm:$0xff] %v860
        %989 = vst [vmem:[%s315 + $0x190] sm:$0xff] %v861
        %990 = vst [vmem:[%s315 + $0x198] sm:$0xff] %v862
        %991 = vst [vmem:[%s315 + $0x1a0] sm:$0xff] %v863
        %992 = vst [vmem:[%s315 + $0x1a8] sm:$0xff] %v864
        %993 = vst [vmem:[%s315 + $0x1b0] sm:$0xff] %v865
        %994 = vst [vmem:[%s315 + $0x1b8] sm:$0xff] %v866
        %995 = vst [vmem:[%s315 + $0x1c0] sm:$0xff] %v867
        %996 = vst [vmem:[%s315 + $0x1c8] sm:$0xff] %v868
        %997 = vst [vmem:[%s315 + $0x1d0] sm:$0xff] %v869
        %998 = vst [vmem:[%s315 + $0x1d8] sm:$0xff] %v870
        %999 = vst [vmem:[%s315 + $0x1e0] sm:$0xff] %v871
        %1000 = vst [vmem:[%s315 + $0x1e8] sm:$0xff] %v872
        %1001 = vst [vmem:[%s315 + $0x1f0] sm:$0xff] %v873
        %1002 = vst [vmem:[%s315 + $0x1f8] sm:$0xff] %v874
        %1003 = vst [vmem:[%s315 + $0x200] sm:$0xff] %v875
        %1004 = vst [vmem:[%s315 + $0x208] sm:$0xff] %v876
        %1005 = vst [vmem:[%s315 + $0x210] sm:$0xff] %v877
        %1006 = vst [vmem:[%s315 + $0x218] sm:$0xff] %v878
        %1007 = vst [vmem:[%s315 + $0x220] sm:$0xff] %v879
        %1008 = vst [vmem:[%s315 + $0x228] sm:$0xff] %v880
        %1009 = vst [vmem:[%s315 + $0x230] sm:$0xff] %v881
        %1010 = vst [vmem:[%s315 + $0x238] sm:$0xff] %v882
        %1011 = vst [vmem:[%s315 + $0x240] sm:$0xff] %v883
        %1012 = vst [vmem:[%s315 + $0x248] sm:$0xff] %v884
        %1013 = vst [vmem:[%s315 + $0x250] sm:$0xff] %v885
        %1014 = vst [vmem:[%s315 + $0x258] sm:$0xff] %v886
        %1015 = vst [vmem:[%s315 + $0x260] sm:$0xff] %v887
        %1016 = vst [vmem:[%s315 + $0x268] sm:$0xff] %v888
        %1017 = vst [vmem:[%s315 + $0x270] sm:$0xff] %v889
        %1018 = vst [vmem:[%s315 + $0x278] sm:$0xff] %v890
        %1019 = vst [vmem:[%s315 + $0x280] sm:$0xff] %v891
        %1020 = vst [vmem:[%s315 + $0x288] sm:$0xff] %v892
        %1021 = vst [vmem:[%s315 + $0x290] sm:$0xff] %v893
        %1022 = vst [vmem:[%s315 + $0x298] sm:$0xff] %v894
        %1023 = vst [vmem:[%s315 + $0x2a0] sm:$0xff] %v895
        %1024 = vst [vmem:[%s315 + $0x2a8] sm:$0xff] %v896
        %1025 = vst [vmem:[%s315 + $0x2b0] sm:$0xff] %v897
        %1026 = vst [vmem:[%s315 + $0x2b8] sm:$0xff] %v898
        %1027 = vst [vmem:[%s315 + $0x2c0] sm:$0xff] %v899
        %1028 = vst [vmem:[%s315 + $0x2c8] sm:$0xff] %v900
        %1029 = vst [vmem:[%s315 + $0x2d0] sm:$0xff] %v901
        %1030 = vst [vmem:[%s315 + $0x2d8] sm:$0xff] %v902
        %1031 = vst [vmem:[%s315 + $0x2e0] sm:$0xff] %v903
        %1032 = vst [vmem:[%s315 + $0x2e8] sm:$0xff] %v904
        %1033 = vst [vmem:[%s315 + $0x2f0] sm:$0xff] %v905
        %1034 = vst [vmem:[%s315 + $0x2f8] sm:$0xff] %v906
        %1035 = vst [vmem:[%s315 + $0x300] sm:$0xff] %v907
        %1036 = vst [vmem:[%s315 + $0x308] sm:$0xff] %v908
        %1037 = vst [vmem:[%s315 + $0x310] sm:$0xff] %v909
        %1038 = vst [vmem:[%s315 + $0x318] sm:$0xff] %v910
        %1039 = vst [vmem:[%s315 + $0x320] sm:$0xff] %v911
        %1040 = vst [vmem:[%s315 + $0x328] sm:$0xff] %v912
        %1041 = vst [vmem:[%s315 + $0x330] sm:$0xff] %v913
        %1042 = vst [vmem:[%s315 + $0x338] sm:$0xff] %v914
        %1043 = vst [vmem:[%s315 + $0x340] sm:$0xff] %v915
        %1044 = vst [vmem:[%s315 + $0x348] sm:$0xff] %v916
        %1045 = vst [vmem:[%s315 + $0x350] sm:$0xff] %v917
        %1046 = vst [vmem:[%s315 + $0x358] sm:$0xff] %v918
        %1047 = vst [vmem:[%s315 + $0x360] sm:$0xff] %v919
        %1048 = vst [vmem:[%s315 + $0x368] sm:$0xff] %v920
        %1049 = vst [vmem:[%s315 + $0x370] sm:$0xff] %v921
        %1050 = vst [vmem:[%s315 + $0x378] sm:$0xff] %v922
        %1051 = vst [vmem:[%s315 + $0x380] sm:$0xff] %v923
        %1052 = vst [vmem:[%s315 + $0x388] sm:$0xff] %v924
        %1053 = vst [vmem:[%s315 + $0x390] sm:$0xff] %v925
        %1054 = vst [vmem:[%s315 + $0x398] sm:$0xff] %v926
        %1055 = vst [vmem:[%s315 + $0x3a0] sm:$0xff] %v927
        %1056 = vst [vmem:[%s315 + $0x3a8] sm:$0xff] %v928
        %1057 = vst [vmem:[%s315 + $0x3b0] sm:$0xff] %v929
        %1058 = vst [vmem:[%s315 + $0x3b8] sm:$0xff] %v930
        %1059 = vst [vmem:[%s315 + $0x3c0] sm:$0xff] %v931
        %1060 = vst [vmem:[%s315 + $0x3c8] sm:$0xff] %v932
        %1061 = vst [vmem:[%s315 + $0x3d0] sm:$0xff] %v933
        %1062 = vst [vmem:[%s315 + $0x3d8] sm:$0xff] %v934
        %1063 = vst [vmem:[%s315 + $0x3e0] sm:$0xff] %v935
        %1064 = vst [vmem:[%s315 + $0x3e8] sm:$0xff] %v936
        %1065 = vst [vmem:[%s315 + $0x3f0] sm:$0xff] %v937
        %1066 = vst [vmem:[%s315 + $0x3f8] sm:$0xff] %v938
        %s1067 = sand.u32 %s201, 1
        %s1068 = scalar_lea.sflag [#allocation3], %s1067
        %s1069 = sand.u32 %s201, 1
        %s1070 = smul.addr %s1069, 1024
        %s1071 = scalar_lea.vmem [#allocation5], %s1070
        // Predicated region
        $region53: #{fixed_seg_net_forward.1} parent=47 // pred_check
          %p1072 = pneg %p211
        $region54: #{fixed_seg_net_forward.1} parent=47 // pred_check_branch
          %1074 = sbr.rel (%p1072) target = $region56
        $region55: #{fixed_seg_net_forward.1} parent=47 // pred_region
          %s1075 = smul.u32 32, %s27
          %s1077 = ssub.s32 16384, 16384
          %1078 = vsyncadd %s1068, %s1077
          %s1079 = smul.addr %s1075, 4
          %s1080 = smul.addr %s26, 256
          %s1081 = sadd.s32 %s1079, %s1080
          %s1082 = smul.addr %s1081, 128
          %s1083 = scalar_lea.hbm %s7, %s1082
          %s1084 = sshll.u32 %s1071, 4
          %s1085 = int_to_ptr.vmem [resolvable:$true] %s1084
          %1090 = dma.vmem_to_hbm [thread:$0]  %s1085, 16384, %s1083, %s1068, 512, 512, 32
        $region56: #{fixed_seg_net_forward.1} parent=47 // pred_fallthru
          _
      $region48: #{fixed_seg_net_forward.1} parent=5 // pred_fallthru
        _
      %p1091 = scmp.le.s32.totalorder 2, %s17
      // Predicated region
      $region57: #{fixed_seg_net_forward.1} parent=5 // pred_check
        %p1092 = pneg %p1091
      $region58: #{fixed_seg_net_forward.1} parent=5 // pred_check_branch
        %1094 = sbr.rel (%p1092) target = $region60
      $region59: #{fixed_seg_net_forward.1} parent=5 // pred_region
        %s1095 = ssub.s32 %s17, 2
        // Predicated region
        $region61: #{fixed_seg_net_forward.1} parent=59 // pred_check
          %p1096 = pneg %p217
        $region62: #{fixed_seg_net_forward.1} parent=59 // pred_check_branch
          %1098 = sbr.rel (%p1096) target = $region64
        $region63: #{fixed_seg_net_forward.1} parent=59 // pred_region
          %s1099 = sand.u32 %s202, 1
          %s1100 = scalar_lea.sflag [#allocation3], %s1099
          %s1101 = sand.u32 %s202, 1
          %s1102 = smul.addr %s1101, 1024
          %s1103 = scalar_lea.vmem [#allocation5], %s1102
          %1104 = dma.done %s1100, 16384
        $region64: #{fixed_seg_net_forward.1} parent=59 // pred_fallthru
          _
      $region60: #{fixed_seg_net_forward.1} parent=5 // pred_fallthru
        _
    $region6: #{fixed_seg_net_forward.1} parent=1 // loop_footer
      %s21 = sadd.s32 1, %s17
    $region7: #{fixed_seg_net_forward.1} parent=1 // loop_footer_branch
      %16 = sbr.rel target = $region3
    $region8: #{fixed_seg_net_forward.1} parent=1 // loop_exit
      _
    %1105 = vsyncpa [#allocation3], 1
    %s1106 = scalar_lea.sflag [#allocation3], 1
    %1107 = vsyncpa %s1106, 1
    %1108 = vsyncpa [#allocation4], 1
    %s1109 = scalar_lea.sflag [#allocation4], 1
    %1110 = vsyncpa %s1109, 1

</llo_original>
